<compile_context>
chip_gen: v7x
topology: tpu7x:2x2x1
jax: 0.10.0
libtpu: 0.0.40
codegen_flags: <defaults>
</compile_context>

<pallas_src>
import functools

import jax
import jax.numpy as jnp
from jax.experimental import pallas as pl
from jax.experimental.pallas import tpu as pltpu

K_DEFAULT = 2  # module default k


def _vmem_limit_bytes():
    """Generation-aware VMEM budget (v5e/v6e: 128 MiB physical, v7x: 64 MiB)."""
    try:
        cap = pltpu.get_tpu_info().vmem_capacity_bytes
        return int(min(cap * 7 // 8, 112 * 1024 * 1024))
    except Exception:
        return 48 * 1024 * 1024  # conservative fallback, safe on all generations


# ---------------------------------------------------------------------------
# Fully fused kernel (small graphs): degrees + k propagation steps + fc in a
# single pallas_call.  The int8 adjacency is widened to f32 exactly once and
# reused for the degree row-sum and every matmul.
# ---------------------------------------------------------------------------
def _sgc_fused_kernel(adj_ref, feat_ref, wt_ref, b_ref, out_ref, embed_ref, *, k):
    a = adj_ref[...].astype(jnp.float32)                          # int8 (0/1) -> f32, once
    deg = jnp.maximum(jnp.sum(a, axis=-1, keepdims=True), 1.0)    # in-degrees (row sums)
    norm = 1.0 / jnp.sqrt(deg)                                    # deg^{-1/2}
    inv_deg = 1.0 / deg                                           # fused norm*norm

    h = feat_ref[...] * norm
    for _ in range(k - 1):                                        # back-to-back norms fused
        h = jnp.dot(a, h, preferred_element_type=jnp.float32) * inv_deg
    h = jnp.dot(a, h, preferred_element_type=jnp.float32) * norm

    embed_ref[...] = h
    out_ref[...] = jnp.dot(h, wt_ref[...], preferred_element_type=jnp.float32) + b_ref[...]


# ---------------------------------------------------------------------------
# Row-tiled streaming kernels (large graphs).  Destination-side scales are
# recomputed per tile from the loaded adjacency rows (free XLU/EUP work).
# ---------------------------------------------------------------------------
def _prop_mid_kernel(adj_ref, x_ref, h_ref):
    # h_tile = (1/deg_tile) * (adj_tile @ x)
    a = adj_ref[...].astype(jnp.float32)
    deg = jnp.maximum(jnp.sum(a, axis=-1, keepdims=True), 1.0)
    h_ref[...] = jnp.dot(a, x_ref[...], preferred_element_type=jnp.float32) * (1.0 / deg)


def _prop_fc_kernel(adj_ref, x_ref, wt_ref, b_ref, out_ref, embed_ref):
    # last propagation step fused with the lane-dense padded linear layer
    a = adj_ref[...].astype(jnp.float32)
    deg = jnp.maximum(jnp.sum(a, axis=-1, keepdims=True), 1.0)
    h = jnp.dot(a, x_ref[...], preferred_element_type=jnp.float32) * (1.0 / jnp.sqrt(deg))
    embed_ref[...] = h
    out_ref[...] = jnp.dot(h, wt_ref[...], preferred_element_type=jnp.float32) + b_ref[...]


def sgc_layer1(adj, feat, weight, bias, k=K_DEFAULT, fuse_threshold=1024):
    assert k >= 1
    N, F_in = feat.shape
    F_out = weight.shape[0]

    # lane-dense padded fc parameters (unmasked final stores); sliced back below
    F_out_p = int(pl.cdiv(F_out, 128) * 128)
    wt_pad = jnp.zeros((F_in, F_out_p), jnp.float32).at[:, :F_out].set(
        weight.T.astype(jnp.float32))
    b_pad = jnp.zeros((1, F_out_p), jnp.float32).at[:, :F_out].set(
        bias.reshape(1, F_out).astype(jnp.float32))

    vmem_limit = _vmem_limit_bytes()

    # ---------------- small graphs: single fully fused call -----------------
    if N <= fuse_threshold:
        adj_i8 = adj.astype(jnp.int8)                 # 0/1 entries: exact, 1 B/entry
        feat_f32 = feat.astype(jnp.float32)
        out_pad, embed = pl.pallas_call(
            functools.partial(_sgc_fused_kernel, k=k),
            out_shape=(jax.ShapeDtypeStruct((N, F_out_p), jnp.float32),
                       jax.ShapeDtypeStruct((N, F_in), jnp.float32)),
            grid=(1,),
            in_specs=[pl.BlockSpec((N, N), lambda i: (0, 0)),
                      pl.BlockSpec((N, F_in), lambda i: (0, 0)),
                      pl.BlockSpec((F_in, F_out_p), lambda i: (0, 0)),
                      pl.BlockSpec((1, F_out_p), lambda i: (0, 0))],
            out_specs=(pl.BlockSpec((N, F_out_p), lambda i: (0, 0)),
                       pl.BlockSpec((N, F_in), lambda i: (0, 0))),
            compiler_params=pltpu.CompilerParams(
                dimension_semantics=("arbitrary",),
                vmem_limit_bytes=vmem_limit),
        )(adj_i8, feat_f32, wt_pad, b_pad)
        return out_pad[:, :F_out], embed

    # ---------------- large graphs: row-tiled streaming ---------------------
    Np = int(pl.cdiv(N, 128) * 128)                   # 128-aligned row/col padding

    # largest row tile that fits the budget while keeping >= 2 "parallel" tiles
    budget = int(vmem_limit * 0.7)
    TM = 128
    for m in (8, 6, 4, 3, 2):                         # 1024, 768, 512, 384, 256
        cand = m * 128
        if Np % cand != 0 or Np // cand < 2:
            continue
        # int8 adj double-buffer + in-kernel f32 widened copy + out buffers + resident x
        need = (cand * Np * (2 * 1 + 4)
                + 2 * cand * (F_out_p + F_in) * 4
                + 2 * Np * F_in * 4)
        if need <= budget:
            TM = cand
            break
    grid = (Np // TM,)

    # cast + pad adjacency in one XLA pass; all later passes read 1 B/entry
    adj_i8 = jnp.pad(adj.astype(jnp.int8), ((0, Np - N), (0, Np - N)))
    # degrees from the compact copy (single compact pass); only needed for the
    # initial source-side scaling -- destination scales are recomputed in-kernel
    degs = jnp.maximum(jnp.sum(adj_i8.astype(jnp.float32), axis=1, keepdims=True), 1.0)
    norm = 1.0 / jnp.sqrt(degs)
    x = jnp.pad(feat.astype(jnp.float32), ((0, Np - N), (0, 0))) * norm

    cparams = pltpu.CompilerParams(
        dimension_semantics=("parallel",),            # independent row tiles (megacore)
        vmem_limit_bytes=vmem_limit)

    adj_spec = pl.BlockSpec((TM, Np), lambda i: (i, 0))      # streamed / pipelined
    x_spec = pl.BlockSpec((Np, F_in), lambda i: (0, 0))      # VMEM resident (const index)
    h_spec = pl.BlockSpec((TM, F_in), lambda i: (i, 0))

    # first k-1 propagation steps:  x <- (1/deg) * (adj @ x)
    for _ in range(k - 1):
        x = pl.pallas_call(
            _prop_mid_kernel,
            out_shape=jax.ShapeDtypeStruct((Np, F_in), jnp.float32),
            grid=grid,
            in_specs=[adj_spec, x_spec],
            out_specs=h_spec,
            compiler_params=cparams,
        )(adj_i8, x)

    # final propagation step fused with fc: embed = norm*(adj@x), out = embed@W^T + b
    out_pad, embed_pad = pl.pallas_call(
        _prop_fc_kernel,
        out_shape=(jax.ShapeDtypeStruct((Np, F_out_p), jnp.float32),
                   jax.ShapeDtypeStruct((Np, F_in), jnp.float32)),
        grid=grid,
        in_specs=[adj_spec, x_spec,
                  pl.BlockSpec((F_in, F_out_p), lambda i: (0, 0)),
                  pl.BlockSpec((1, F_out_p), lambda i: (0, 0))],
        out_specs=(pl.BlockSpec((TM, F_out_p), lambda i: (i, 0)), h_spec),
        compiler_params=cparams,
    )(adj_i8, x, wt_pad, b_pad)

    return out_pad[:N, :F_out], embed_pad[:N, :]


def sgc_reference(adj, feat, weight, bias, k=K_DEFAULT):
    degs = jnp.maximum(jnp.sum(adj, axis=1, keepdims=True), 1.0)
    norm = degs ** -0.5
    h = feat
    for _ in range(k):
        h = h * norm
        h = adj @ h
        h = h * norm
    return h @ weight.T + bias, h


if __name__ == "__main__":
    F_in, F_out = 32, 16

    def make_inputs(key, n):
        k_adj, k_feat, k_w = jax.random.split(key, 3)
        adj = (jax.random.uniform(k_adj, (n, n)) < 0.1).astype(jnp.float32)
        adj = jnp.maximum(adj, jnp.eye(n, dtype=jnp.float32))          # self-loops
        feat = jax.random.normal(k_feat, (n, F_in), dtype=jnp.float32)
        bound = (6.0 / (F_in + F_out)) ** 0.5                          # xavier_uniform
        weight = jax.random.uniform(k_w, (F_out, F_in), minval=-bound,
                                    maxval=bound, dtype=jnp.float32)
        bias = jnp.zeros((F_out,), dtype=jnp.float32)
        return adj, feat, weight, bias

    key0, key1 = jax.random.split(jax.random.PRNGKey(0))

    # small graph -> fully fused single-call path
    adj, feat, weight, bias = make_inputs(key0, 128)
    out, embed = sgc_layer1(adj, feat, weight, bias)
    jax.block_until_ready(out)
    jax.block_until_ready(embed)
    out_ref, embed_ref = sgc_reference(adj, feat, weight, bias)
    assert jnp.allclose(out, out_ref, atol=1e-4, rtol=1e-4)
    assert jnp.allclose(embed, embed_ref, atol=1e-4, rtol=1e-4)

    # non-128-multiple graph, forced onto the row-tiled streaming path
    # (exercises padding, in-kernel degrees, and the 2-tile "parallel" grid)
    adj2, feat2, weight2, bias2 = make_inputs(key1, 200)
    out2, embed2 = sgc_layer1(adj2, feat2, weight2, bias2, fuse_threshold=0)
    jax.block_until_ready(out2)
    jax.block_until_ready(embed2)
    out2_ref, embed2_ref = sgc_reference(adj2, feat2, weight2, bias2)
    assert jnp.allclose(out2, out2_ref, atol=1e-4, rtol=1e-4)
    assert jnp.allclose(embed2, embed2_ref, atol=1e-4, rtol=1e-4)

    print("KERNEL_OK")
</pallas_src>

<mosaic_0001>
module attributes {stable_mosaic.version = 11 : i64} {
  func.func @_sgc_fused_kernel(%arg0: i32, %arg1: memref<128x128xi8, #tpu.memory_space<vmem>>, %arg2: memref<128x32xf32, #tpu.memory_space<vmem>>, %arg3: memref<32x128xf32, #tpu.memory_space<vmem>>, %arg4: memref<1x128xf32, #tpu.memory_space<vmem>>, %arg5: memref<128x128xf32, #tpu.memory_space<vmem>>, %arg6: memref<128x32xf32, #tpu.memory_space<vmem>>) attributes {dimension_semantics = [#tpu.dimension_semantics<arbitrary>], iteration_bounds = array<i64: 1>, scalar_prefetch = 0 : i64, scratch_operands = 0 : i64, tpu.core_type = #tpu.core_type<tc>, window_params = [{pipeline_mode = #tpu.pipeline_mode<synchronous>, transform_indices = @transform_0, window_bounds = array<i64: 128, 128>}, {pipeline_mode = #tpu.pipeline_mode<synchronous>, transform_indices = @transform_1, window_bounds = array<i64: 128, 32>}, {pipeline_mode = #tpu.pipeline_mode<synchronous>, transform_indices = @transform_2, window_bounds = array<i64: 32, 128>}, {pipeline_mode = #tpu.pipeline_mode<synchronous>, transform_indices = @transform_3, window_bounds = array<i64: 1, 128>}, {pipeline_mode = #tpu.pipeline_mode<synchronous>, transform_indices = @transform_4, window_bounds = array<i64: 128, 128>}, {pipeline_mode = #tpu.pipeline_mode<synchronous>, transform_indices = @transform_5, window_bounds = array<i64: 128, 32>}]} {
    %c0 = arith.constant 0 : index
    %c0_0 = arith.constant 0 : index
    %0 = vector.load %arg1[%c0, %c0_0] : memref<128x128xi8, #tpu.memory_space<vmem>>, vector<128x128xi8>
    %1 = arith.sitofp %0 : vector<128x128xi8> to vector<128x128xf32>
    %cst = arith.constant dense<0.000000e+00> : vector<128xf32>
    %2 = vector.multi_reduction <add>, %1, %cst [1] : vector<128x128xf32> to vector<128xf32>
    %3 = vector.shape_cast %2 : vector<128xf32> to vector<128x1xf32>
    %cst_1 = arith.constant 1.000000e+00 : f32
    %4 = vector.broadcast %cst_1 : f32 to vector<128x1xf32>
    %5 = arith.maximumf %3, %4 : vector<128x1xf32>
    %6 = math.sqrt %5 : vector<128x1xf32>
    %cst_2 = arith.constant 1.000000e+00 : f32
    %7 = vector.broadcast %cst_2 : f32 to vector<128x1xf32>
    %8 = arith.divf %7, %6 : vector<128x1xf32>
    %cst_3 = arith.constant 1.000000e+00 : f32
    %9 = vector.broadcast %cst_3 : f32 to vector<128x1xf32>
    %10 = arith.divf %9, %5 : vector<128x1xf32>
    %c0_4 = arith.constant 0 : index
    %c0_5 = arith.constant 0 : index
    %11 = vector.load %arg2[%c0_4, %c0_5] : memref<128x32xf32, #tpu.memory_space<vmem>>, vector<128x32xf32>
    %12 = vector.broadcast %8 : vector<128x1xf32> to vector<128x32xf32>
    %13 = arith.mulf %11, %12 : vector<128x32xf32>
    %cst_6 = arith.constant dense<0.000000e+00> : vector<128x32xf32>
    %14 = tpu.matmul %1, %13, %cst_6 {dimension_numbers = #tpu.dot_dimension_numbers<[1], [0], [0], [1], [0, 0, 1, 1], [], []>} : vector<128x128xf32>, vector<128x32xf32>, vector<128x32xf32> -> vector<128x32xf32>
    %15 = vector.broadcast %10 : vector<128x1xf32> to vector<128x32xf32>
    %16 = arith.mulf %14, %15 : vector<128x32xf32>
    %cst_7 = arith.constant dense<0.000000e+00> : vector<128x32xf32>
    %17 = tpu.matmul %1, %16, %cst_7 {dimension_numbers = #tpu.dot_dimension_numbers<[1], [0], [0], [1], [0, 0, 1, 1], [], []>} : vector<128x128xf32>, vector<128x32xf32>, vector<128x32xf32> -> vector<128x32xf32>
    %18 = vector.broadcast %8 : vector<128x1xf32> to vector<128x32xf32>
    %19 = arith.mulf %17, %18 : vector<128x32xf32>
    %c0_8 = arith.constant 0 : index
    %c0_9 = arith.constant 0 : index
    %20 = vector.load %arg6[%c0_8, %c0_9] : memref<128x32xf32, #tpu.memory_space<vmem>>, vector<128x32xf32>
    tpu.vector_store %arg6[%c0_8, %c0_9], %19 {strides = array<i32>} : memref<128x32xf32, #tpu.memory_space<vmem>>, vector<128x32xf32>,
    %c0_10 = arith.constant 0 : index
    %c0_11 = arith.constant 0 : index
    %21 = vector.load %arg3[%c0_10, %c0_11] : memref<32x128xf32, #tpu.memory_space<vmem>>, vector<32x128xf32>
    %cst_12 = arith.constant dense<0.000000e+00> : vector<128x128xf32>
    %22 = tpu.matmul %19, %21, %cst_12 {dimension_numbers = #tpu.dot_dimension_numbers<[1], [0], [0], [1], [0, 0, 1, 1], [], []>} : vector<128x32xf32>, vector<32x128xf32>, vector<128x128xf32> -> vector<128x128xf32>
    %c0_13 = arith.constant 0 : index
    %c0_14 = arith.constant 0 : index
    %23 = vector.load %arg4[%c0_13, %c0_14] : memref<1x128xf32, #tpu.memory_space<vmem>>, vector<1x128xf32>
    %24 = vector.broadcast %23 : vector<1x128xf32> to vector<128x128xf32>
    %25 = arith.addf %22, %24 : vector<128x128xf32>
    %c0_15 = arith.constant 0 : index
    %c0_16 = arith.constant 0 : index
    %26 = vector.load %arg5[%c0_15, %c0_16] : memref<128x128xf32, #tpu.memory_space<vmem>>, vector<128x128xf32>
    tpu.vector_store %arg5[%c0_15, %c0_16], %25 {strides = array<i32>} : memref<128x128xf32, #tpu.memory_space<vmem>>, vector<128x128xf32>,
    return
  }
  func.func @transform_0(%arg0: i32) -> (i32, i32) {
    %c0_i32 = arith.constant 0 : i32
    %c0_i32_0 = arith.constant 0 : i32
    %c0_i32_1 = arith.constant 0 : i32
    return %c0_i32, %c0_i32_0 : i32, i32
  }
  func.func @transform_1(%arg0: i32) -> (i32, i32) {
    %c0_i32 = arith.constant 0 : i32
    %c0_i32_0 = arith.constant 0 : i32
    %c0_i32_1 = arith.constant 0 : i32
    return %c0_i32, %c0_i32_0 : i32, i32
  }
  func.func @transform_2(%arg0: i32) -> (i32, i32) {
    %c0_i32 = arith.constant 0 : i32
    %c0_i32_0 = arith.constant 0 : i32
    %c0_i32_1 = arith.constant 0 : i32
    return %c0_i32, %c0_i32_0 : i32, i32
  }
  func.func @transform_3(%arg0: i32) -> (i32, i32) {
    %c0_i32 = arith.constant 0 : i32
    %c0_i32_0 = arith.constant 0 : i32
    %c0_i32_1 = arith.constant 0 : i32
    return %c0_i32, %c0_i32_0 : i32, i32
  }
  func.func @transform_4(%arg0: i32) -> (i32, i32) {
    %c0_i32 = arith.constant 0 : i32
    %c0_i32_0 = arith.constant 0 : i32
    %c0_i32_1 = arith.constant 0 : i32
    return %c0_i32, %c0_i32_0 : i32, i32
  }
  func.func @transform_5(%arg0: i32) -> (i32, i32) {
    %c0_i32 = arith.constant 0 : i32
    %c0_i32_0 = arith.constant 0 : i32
    %c0_i32_1 = arith.constant 0 : i32
    return %c0_i32, %c0_i32_0 : i32, i32
  }
}

</mosaic_0001>

<llo_original>
// kernel: tpu_custom_call.1
$region0: #{tpu_custom_call.1}
  #allocation0 [shape = 'u32[]', space=smem, size = 0x4, offset = 0x4, fixed_abs, tag = 'smem constant byte address 0x4 - core index']
  #allocation1 [shape = 'u32[144,128]{1,0:T(1,128)}', space=vmem, size = 0x12000, scoped, tag = 'internal scratch']
  %s0 = inlined_call_operand.vmem [shape: s8[128,128], index: 0, kind: input, shape index: {}]
  %s1 = inlined_call_operand.vmem [shape: f32[128,32], index: 1, kind: input, shape index: {}]
  %s2 = inlined_call_operand.vmem [shape: f32[32,128], index: 2, kind: input, shape index: {}]
  %s3 = inlined_call_operand.vmem [shape: f32[1,128], index: 3, kind: input, shape index: {}]
  %s4 = inlined_call_operand.hbm [shape: f32[128,128], index: 4, kind: output, shape index: {0}]
  %s5 = inlined_call_operand.vmem [shape: f32[128,32], index: 5, kind: output, shape index: {1}]
  %6 = xla_tuple %s4, %s5
  %s7 = sld [smem:[#allocation0]]
  $region34: #{tpu_custom_call.1} parent=0
    _
  %s9 = ssub.s32 1, %s7
  %s10 = scalar_select 0, %s9, %s7
  $region1: #{tpu_custom_call.1} parent=0
    #allocation2 [shape = 'u8[65536]{0}', space=vmem, size = 0x10000, scoped, tag = 'output window, operand 0, single buffered']
    #allocation3 [shape = 's32[1]{0}', space=sflag, size = 0x4, scoped, tag = 'scoped memory for tpu_custom_call.1']
    %11 = vsyncpa [#allocation3], 0
    // Predicated region
    $region2: #{tpu_custom_call.1} parent=1 // pred_check
      _
    $region3: #{tpu_custom_call.1} parent=1 // pred_check_branch
      %13 = sbr.rel (0) target = $region5
    $region4: #{tpu_custom_call.1} parent=1 // pred_region
      _
    $region5: #{tpu_custom_call.1} parent=1 // pred_fallthru
      _
    // Predicated region
    $region6: #{tpu_custom_call.1} parent=1 // pred_check
      _
    $region7: #{tpu_custom_call.1} parent=1 // pred_check_branch
      %15 = sbr.rel (0) target = $region9
    $region8: #{tpu_custom_call.1} parent=1 // pred_region
      _
    $region9: #{tpu_custom_call.1} parent=1 // pred_fallthru
      _
    // Predicated region
    $region10: #{tpu_custom_call.1} parent=1 // pred_check
      _
    $region11: #{tpu_custom_call.1} parent=1 // pred_check_branch
      %17 = sbr.rel (0) target = $region13
    $region12: #{tpu_custom_call.1} parent=1 // pred_region
      _
    $region13: #{tpu_custom_call.1} parent=1 // pred_fallthru
      _
    // Predicated region
    $region14: #{tpu_custom_call.1} parent=1 // pred_check
      _
    $region15: #{tpu_custom_call.1} parent=1 // pred_check_branch
      %19 = sbr.rel (0) target = $region17
    $region16: #{tpu_custom_call.1} parent=1 // pred_region
      _
    $region17: #{tpu_custom_call.1} parent=1 // pred_fallthru
      _
    %v20 = vld [vmem:[%s0] sm:$0xff]
    %v21 = vld [vmem:[%s0 + $0x8] sm:$0xff]
    %v22 = vld [vmem:[%s0 + $0x10] sm:$0xff]
    %v23 = vld [vmem:[%s0 + $0x18] sm:$0xff]
    %v24 = vunpack.c.0.s8 %v20
    %v25 = vunpack.c.1.s8 %v20
    %v26 = vunpack.c.2.s8 %v20
    %v27 = vunpack.c.3.s8 %v20
    %v28 = vunpack.c.0.s8 %v21
    %v29 = vunpack.c.1.s8 %v21
    %v30 = vunpack.c.2.s8 %v21
    %v31 = vunpack.c.3.s8 %v21
    %v32 = vunpack.c.0.s8 %v22
    %v33 = vunpack.c.1.s8 %v22
    %v34 = vunpack.c.2.s8 %v22
    %v35 = vunpack.c.3.s8 %v22
    %v36 = vunpack.c.0.s8 %v23
    %v37 = vunpack.c.1.s8 %v23
    %v38 = vunpack.c.2.s8 %v23
    %v39 = vunpack.c.3.s8 %v23
    %v40 = vcvt.s32.f32 %v24
    %v41 = vcvt.s32.f32 %v25
    %v42 = vcvt.s32.f32 %v26
    %v43 = vcvt.s32.f32 %v27
    %v44 = vcvt.s32.f32 %v28
    %v45 = vcvt.s32.f32 %v29
    %v46 = vcvt.s32.f32 %v30
    %v47 = vcvt.s32.f32 %v31
    %v48 = vcvt.s32.f32 %v32
    %v49 = vcvt.s32.f32 %v33
    %v50 = vcvt.s32.f32 %v34
    %v51 = vcvt.s32.f32 %v35
    %v52 = vcvt.s32.f32 %v36
    %v53 = vcvt.s32.f32 %v37
    %v54 = vcvt.s32.f32 %v38
    %v55 = vcvt.s32.f32 %v39
    %56 = vadd.xlane.f32.xlu0 %v40
    %v57 = vpop.xlane.xlu0 %56
    %58 = vadd.xlane.f32.xlu0 %v41
    %v59 = vpop.xlane.xlu0 %58
    %60 = vadd.xlane.f32.xlu0 %v42
    %v61 = vpop.xlane.xlu0 %60
    %62 = vadd.xlane.f32.xlu0 %v43
    %v63 = vpop.xlane.xlu0 %62
    %64 = vadd.xlane.f32.xlu0 %v44
    %v65 = vpop.xlane.xlu0 %64
    %66 = vadd.xlane.f32.xlu0 %v45
    %v67 = vpop.xlane.xlu0 %66
    %68 = vadd.xlane.f32.xlu0 %v46
    %v69 = vpop.xlane.xlu0 %68
    %70 = vadd.xlane.f32.xlu0 %v47
    %v71 = vpop.xlane.xlu0 %70
    %72 = vadd.xlane.f32.xlu0 %v48
    %v73 = vpop.xlane.xlu0 %72
    %74 = vadd.xlane.f32.xlu0 %v49
    %v75 = vpop.xlane.xlu0 %74
    %76 = vadd.xlane.f32.xlu0 %v50
    %v77 = vpop.xlane.xlu0 %76
    %78 = vadd.xlane.f32.xlu0 %v51
    %v79 = vpop.xlane.xlu0 %78
    %80 = vadd.xlane.f32.xlu0 %v52
    %v81 = vpop.xlane.xlu0 %80
    %82 = vadd.xlane.f32.xlu0 %v53
    %v83 = vpop.xlane.xlu0 %82
    %84 = vadd.xlane.f32.xlu0 %v54
    %v85 = vpop.xlane.xlu0 %84
    %86 = vadd.xlane.f32.xlu0 %v55
    %v87 = vpop.xlane.xlu0 %86
    %v88 = vmax.f32 %v57, 1.0
    %v89 = vmax.f32 %v59, 1.0
    %v90 = vmax.f32 %v61, 1.0
    %v91 = vmax.f32 %v63, 1.0
    %v92 = vmax.f32 %v65, 1.0
    %v93 = vmax.f32 %v67, 1.0
    %v94 = vmax.f32 %v69, 1.0
    %v95 = vmax.f32 %v71, 1.0
    %v96 = vmax.f32 %v73, 1.0
    %v97 = vmax.f32 %v75, 1.0
    %v98 = vmax.f32 %v77, 1.0
    %v99 = vmax.f32 %v79, 1.0
    %v100 = vmax.f32 %v81, 1.0
    %v101 = vmax.f32 %v83, 1.0
    %v102 = vmax.f32 %v85, 1.0
    %v103 = vmax.f32 %v87, 1.0
    %v104 = vrsqrt.pop %v88
    %v105 = vmul.f32 %v88, %v104
    %vm106 = vcmp.eq.f32.partialorder %v88, inf
    %v107 = vsel %vm106, %v88, %v105
    %vm108 = vcmp.eq.f32.partialorder %v88, 0.0
    %v109 = vand.u32 %v88, 2147483648
    %v110 = vsel %vm108, %v109, %v107
    %v111 = vrsqrt.pop %v89
    %v112 = vmul.f32 %v89, %v111
    %vm113 = vcmp.eq.f32.partialorder %v89, inf
    %v114 = vsel %vm113, %v89, %v112
    %vm115 = vcmp.eq.f32.partialorder %v89, 0.0
    %v116 = vand.u32 %v89, 2147483648
    %v117 = vsel %vm115, %v116, %v114
    %v118 = vrsqrt.pop %v90
    %v119 = vmul.f32 %v90, %v118
    %vm120 = vcmp.eq.f32.partialorder %v90, inf
    %v121 = vsel %vm120, %v90, %v119
    %vm122 = vcmp.eq.f32.partialorder %v90, 0.0
    %v123 = vand.u32 %v90, 2147483648
    %v124 = vsel %vm122, %v123, %v121
    %v125 = vrsqrt.pop %v91
    %v126 = vmul.f32 %v91, %v125
    %vm127 = vcmp.eq.f32.partialorder %v91, inf
    %v128 = vsel %vm127, %v91, %v126
    %vm129 = vcmp.eq.f32.partialorder %v91, 0.0
    %v130 = vand.u32 %v91, 2147483648
    %v131 = vsel %vm129, %v130, %v128
    %v132 = vrsqrt.pop %v92
    %v133 = vmul.f32 %v92, %v132
    %vm134 = vcmp.eq.f32.partialorder %v92, inf
    %v135 = vsel %vm134, %v92, %v133
    %vm136 = vcmp.eq.f32.partialorder %v92, 0.0
    %v137 = vand.u32 %v92, 2147483648
    %v138 = vsel %vm136, %v137, %v135
    %v139 = vrsqrt.pop %v93
    %v140 = vmul.f32 %v93, %v139
    %vm141 = vcmp.eq.f32.partialorder %v93, inf
    %v142 = vsel %vm141, %v93, %v140
    %vm143 = vcmp.eq.f32.partialorder %v93, 0.0
    %v144 = vand.u32 %v93, 2147483648
    %v145 = vsel %vm143, %v144, %v142
    %v146 = vrsqrt.pop %v94
    %v147 = vmul.f32 %v94, %v146
    %vm148 = vcmp.eq.f32.partialorder %v94, inf
    %v149 = vsel %vm148, %v94, %v147
    %vm150 = vcmp.eq.f32.partialorder %v94, 0.0
    %v151 = vand.u32 %v94, 2147483648
    %v152 = vsel %vm150, %v151, %v149
    %v153 = vrsqrt.pop %v95
    %v154 = vmul.f32 %v95, %v153
    %vm155 = vcmp.eq.f32.partialorder %v95, inf
    %v156 = vsel %vm155, %v95, %v154
    %vm157 = vcmp.eq.f32.partialorder %v95, 0.0
    %v158 = vand.u32 %v95, 2147483648
    %v159 = vsel %vm157, %v158, %v156
    %v160 = vrsqrt.pop %v96
    %v161 = vmul.f32 %v96, %v160
    %vm162 = vcmp.eq.f32.partialorder %v96, inf
    %v163 = vsel %vm162, %v96, %v161
    %vm164 = vcmp.eq.f32.partialorder %v96, 0.0
    %v165 = vand.u32 %v96, 2147483648
    %v166 = vsel %vm164, %v165, %v163
    %v167 = vrsqrt.pop %v97
    %v168 = vmul.f32 %v97, %v167
    %vm169 = vcmp.eq.f32.partialorder %v97, inf
    %v170 = vsel %vm169, %v97, %v168
    %vm171 = vcmp.eq.f32.partialorder %v97, 0.0
    %v172 = vand.u32 %v97, 2147483648
    %v173 = vsel %vm171, %v172, %v170
    %v174 = vrsqrt.pop %v98
    %v175 = vmul.f32 %v98, %v174
    %vm176 = vcmp.eq.f32.partialorder %v98, inf
    %v177 = vsel %vm176, %v98, %v175
    %vm178 = vcmp.eq.f32.partialorder %v98, 0.0
    %v179 = vand.u32 %v98, 2147483648
    %v180 = vsel %vm178, %v179, %v177
    %v181 = vrsqrt.pop %v99
    %v182 = vmul.f32 %v99, %v181
    %vm183 = vcmp.eq.f32.partialorder %v99, inf
    %v184 = vsel %vm183, %v99, %v182
    %vm185 = vcmp.eq.f32.partialorder %v99, 0.0
    %v186 = vand.u32 %v99, 2147483648
    %v187 = vsel %vm185, %v186, %v184
    %v188 = vrsqrt.pop %v100
    %v189 = vmul.f32 %v100, %v188
    %vm190 = vcmp.eq.f32.partialorder %v100, inf
    %v191 = vsel %vm190, %v100, %v189
    %vm192 = vcmp.eq.f32.partialorder %v100, 0.0
    %v193 = vand.u32 %v100, 2147483648
    %v194 = vsel %vm192, %v193, %v191
    %v195 = vrsqrt.pop %v101
    %v196 = vmul.f32 %v101, %v195
    %vm197 = vcmp.eq.f32.partialorder %v101, inf
    %v198 = vsel %vm197, %v101, %v196
    %vm199 = vcmp.eq.f32.partialorder %v101, 0.0
    %v200 = vand.u32 %v101, 2147483648
    %v201 = vsel %vm199, %v200, %v198
    %v202 = vrsqrt.pop %v102
    %v203 = vmul.f32 %v102, %v202
    %vm204 = vcmp.eq.f32.partialorder %v102, inf
    %v205 = vsel %vm204, %v102, %v203
    %vm206 = vcmp.eq.f32.partialorder %v102, 0.0
    %v207 = vand.u32 %v102, 2147483648
    %v208 = vsel %vm206, %v207, %v205
    %v209 = vrsqrt.pop %v103
    %v210 = vmul.f32 %v103, %v209
    %vm211 = vcmp.eq.f32.partialorder %v103, inf
    %v212 = vsel %vm211, %v103, %v210
    %vm213 = vcmp.eq.f32.partialorder %v103, 0.0
    %v214 = vand.u32 %v103, 2147483648
    %v215 = vsel %vm213, %v214, %v212
    %v216 = vrcp.pop %v110
    %v217 = vmul.f32 1.0, %v216
    %v218 = vrcp.pop %v117
    %v219 = vmul.f32 1.0, %v218
    %v220 = vrcp.pop %v124
    %v221 = vmul.f32 1.0, %v220
    %v222 = vrcp.pop %v131
    %v223 = vmul.f32 1.0, %v222
    %v224 = vrcp.pop %v138
    %v225 = vmul.f32 1.0, %v224
    %v226 = vrcp.pop %v145
    %v227 = vmul.f32 1.0, %v226
    %v228 = vrcp.pop %v152
    %v229 = vmul.f32 1.0, %v228
    %v230 = vrcp.pop %v159
    %v231 = vmul.f32 1.0, %v230
    %v232 = vrcp.pop %v166
    %v233 = vmul.f32 1.0, %v232
    %v234 = vrcp.pop %v173
    %v235 = vmul.f32 1.0, %v234
    %v236 = vrcp.pop %v180
    %v237 = vmul.f32 1.0, %v236
    %v238 = vrcp.pop %v187
    %v239 = vmul.f32 1.0, %v238
    %v240 = vrcp.pop %v194
    %v241 = vmul.f32 1.0, %v240
    %v242 = vrcp.pop %v201
    %v243 = vmul.f32 1.0, %v242
    %v244 = vrcp.pop %v208
    %v245 = vmul.f32 1.0, %v244
    %v246 = vrcp.pop %v215
    %v247 = vmul.f32 1.0, %v246
    %v248 = vrcp.pop %v88
    %v249 = vmul.f32 1.0, %v248
    %v250 = vrcp.pop %v89
    %v251 = vmul.f32 1.0, %v250
    %v252 = vrcp.pop %v90
    %v253 = vmul.f32 1.0, %v252
    %v254 = vrcp.pop %v91
    %v255 = vmul.f32 1.0, %v254
    %v256 = vrcp.pop %v92
    %v257 = vmul.f32 1.0, %v256
    %v258 = vrcp.pop %v93
    %v259 = vmul.f32 1.0, %v258
    %v260 = vrcp.pop %v94
    %v261 = vmul.f32 1.0, %v260
    %v262 = vrcp.pop %v95
    %v263 = vmul.f32 1.0, %v262
    %v264 = vrcp.pop %v96
    %v265 = vmul.f32 1.0, %v264
    %v266 = vrcp.pop %v97
    %v267 = vmul.f32 1.0, %v266
    %v268 = vrcp.pop %v98
    %v269 = vmul.f32 1.0, %v268
    %v270 = vrcp.pop %v99
    %v271 = vmul.f32 1.0, %v270
    %v272 = vrcp.pop %v100
    %v273 = vmul.f32 1.0, %v272
    %v274 = vrcp.pop %v101
    %v275 = vmul.f32 1.0, %v274
    %v276 = vrcp.pop %v102
    %v277 = vmul.f32 1.0, %v276
    %v278 = vrcp.pop %v103
    %v279 = vmul.f32 1.0, %v278
    %v280 = vld [vmem:[%s1] sm:$0xff]
    %v281 = vld [vmem:[%s1 + $0x8] sm:$0xff]
    %v282 = vld [vmem:[%s1 + $0x10] sm:$0xff]
    %v283 = vld [vmem:[%s1 + $0x18] sm:$0xff]
    %v284 = vld [vmem:[%s1 + $0x20] sm:$0xff]
    %v285 = vld [vmem:[%s1 + $0x28] sm:$0xff]
    %v286 = vld [vmem:[%s1 + $0x30] sm:$0xff]
    %v287 = vld [vmem:[%s1 + $0x38] sm:$0xff]
    %v288 = vld [vmem:[%s1 + $0x40] sm:$0xff]
    %v289 = vld [vmem:[%s1 + $0x48] sm:$0xff]
    %v290 = vld [vmem:[%s1 + $0x50] sm:$0xff]
    %v291 = vld [vmem:[%s1 + $0x58] sm:$0xff]
    %v292 = vld [vmem:[%s1 + $0x60] sm:$0xff]
    %v293 = vld [vmem:[%s1 + $0x68] sm:$0xff]
    %v294 = vld [vmem:[%s1 + $0x70] sm:$0xff]
    %v295 = vld [vmem:[%s1 + $0x78] sm:$0xff]
    %v296 = vmul.f32 %v280, %v217
    %v297 = vmul.f32 %v281, %v219
    %v298 = vmul.f32 %v282, %v221
    %v299 = vmul.f32 %v283, %v223
    %v300 = vmul.f32 %v284, %v225
    %v301 = vmul.f32 %v285, %v227
    %v302 = vmul.f32 %v286, %v229
    %v303 = vmul.f32 %v287, %v231
    %v304 = vmul.f32 %v288, %v233
    %v305 = vmul.f32 %v289, %v235
    %v306 = vmul.f32 %v290, %v237
    %v307 = vmul.f32 %v291, %v239
    %v308 = vmul.f32 %v292, %v241
    %v309 = vmul.f32 %v293, %v243
    %v310 = vmul.f32 %v294, %v245
    %v311 = vmul.f32 %v295, %v247
    %312 = vmatprep.subr.mxu0 0.0
    %313 = vmatpush1.msra.mxu0 %v296
    %314 = vmatprep.subr.mxu0 0.0
    %315 = vmatpush1.msra.mxu0 %v297
    %316 = vmatprep.subr.mxu0 0.0
    %317 = vmatpush1.msra.mxu0 %v298
    %318 = vmatprep.subr.mxu0 0.0
    %319 = vmatpush1.msra.mxu0 %v299
    %320 = vmatprep.subr.mxu0 0.0
    %321 = vmatpush1.msra.mxu0 %v300
    %322 = vmatprep.subr.mxu0 0.0
    %323 = vmatpush1.msra.mxu0 %v301
    %324 = vmatprep.subr.mxu0 0.0
    %325 = vmatpush1.msra.mxu0 %v302
    %326 = vmatprep.subr.mxu0 0.0
    %327 = vmatpush1.msra.mxu0 %v303
    %328 = vmatprep.subr.mxu0 0.0
    %329 = vmatpush1.msra.mxu0 %v304
    %330 = vmatprep.subr.mxu0 0.0
    %331 = vmatpush1.msra.mxu0 %v305
    %332 = vmatprep.subr.mxu0 0.0
    %333 = vmatpush1.msra.mxu0 %v306
    %334 = vmatprep.subr.mxu0 0.0
    %335 = vmatpush1.msra.mxu0 %v307
    %336 = vmatprep.subr.mxu0 0.0
    %337 = vmatpush1.msra.mxu0 %v308
    %338 = vmatprep.subr.mxu0 0.0
    %339 = vmatpush1.msra.mxu0 %v309
    %340 = vmatprep.subr.mxu0 0.0
    %341 = vmatpush1.msra.mxu0 %v310
    %342 = vmatprep.subr.mxu0 0.0
    %343 = vmatpush1.msra.mxu0 %v311
    %344 = vmatprep.subr.mxu0 0.0
    %345 = vmatpush1.msra.mxu0 0.0
    %346 = vmatprep.subr.mxu0 0.0
    %347 = vmatpush1.msra.mxu0 0.0
    %348 = vmatprep.subr.mxu0 0.0
    %349 = vmatpush1.msra.mxu0 0.0
    %350 = vmatprep.subr.mxu0 0.0
    %351 = vmatpush1.msra.mxu0 0.0
    %352 = vmatprep.subr.mxu0 0.0
    %353 = vmatpush1.msra.mxu0 0.0
    %354 = vmatprep.subr.mxu0 0.0
    %355 = vmatpush1.msra.mxu0 0.0
    %356 = vmatprep.subr.mxu0 0.0
    %357 = vmatpush1.msra.mxu0 0.0
    %358 = vmatprep.subr.mxu0 0.0
    %359 = vmatpush1.msra.mxu0 0.0
    %360 = vmatprep.subr.mxu0 0.0
    %361 = vmatpush1.msra.mxu0 0.0
    %362 = vmatprep.subr.mxu0 0.0
    %363 = vmatpush1.msra.mxu0 0.0
    %364 = vmatprep.subr.mxu0 0.0
    %365 = vmatpush1.msra.mxu0 0.0
    %366 = vmatprep.subr.mxu0 0.0
    %367 = vmatpush1.msra.mxu0 0.0
    %368 = vmatprep.subr.mxu0 0.0
    %369 = vmatpush1.msra.mxu0 0.0
    %370 = vmatprep.subr.mxu0 0.0
    %371 = vmatpush1.msra.mxu0 0.0
    %372 = vmatprep.subr.mxu0 0.0
    %373 = vmatpush1.msra.mxu0 0.0
    %374 = vmatprep.subr.mxu0 0.0
    %375 = vmatpush1.msra.mxu0 0.0
    %376 = vmatprep.mubr.f32.mxu0 0.0
    %377 = vmatmul.mubr.f32.gmra.mrb[0].mxu0 %v40
    %v378 = vpop.f32.mrb[0].mxu0
    %v379 = vadd.f32 0.0, %v378
    %v380 = vpop.f32.mrb[0].mxu0
    %381 = vmatprep.mubr.f32.mxu0 0.0
    %382 = vmatmul.mubr.f32.gmra.mrb[0].mxu0 %v41
    %v383 = vpop.f32.mrb[0].mxu0
    %v384 = vadd.f32 0.0, %v383
    %v385 = vpop.f32.mrb[0].mxu0
    %386 = vmatprep.mubr.f32.mxu0 0.0
    %387 = vmatmul.mubr.f32.gmra.mrb[0].mxu0 %v42
    %v388 = vpop.f32.mrb[0].mxu0
    %v389 = vadd.f32 0.0, %v388
    %v390 = vpop.f32.mrb[0].mxu0
    %391 = vmatprep.mubr.f32.mxu0 0.0
    %392 = vmatmul.mubr.f32.gmra.mrb[0].mxu0 %v43
    %v393 = vpop.f32.mrb[0].mxu0
    %v394 = vadd.f32 0.0, %v393
    %v395 = vpop.f32.mrb[0].mxu0
    %396 = vmatprep.mubr.f32.mxu0 0.0
    %397 = vmatmul.mubr.f32.gmra.mrb[0].mxu0 %v44
    %v398 = vpop.f32.mrb[0].mxu0
    %v399 = vadd.f32 0.0, %v398
    %v400 = vpop.f32.mrb[0].mxu0
    %401 = vmatprep.mubr.f32.mxu0 0.0
    %402 = vmatmul.mubr.f32.gmra.mrb[0].mxu0 %v45
    %v403 = vpop.f32.mrb[0].mxu0
    %v404 = vadd.f32 0.0, %v403
    %v405 = vpop.f32.mrb[0].mxu0
    %406 = vmatprep.mubr.f32.mxu0 0.0
    %407 = vmatmul.mubr.f32.gmra.mrb[0].mxu0 %v46
    %v408 = vpop.f32.mrb[0].mxu0
    %v409 = vadd.f32 0.0, %v408
    %v410 = vpop.f32.mrb[0].mxu0
    %411 = vmatprep.mubr.f32.mxu0 0.0
    %412 = vmatmul.mubr.f32.gmra.mrb[0].mxu0 %v47
    %v413 = vpop.f32.mrb[0].mxu0
    %v414 = vadd.f32 0.0, %v413
    %v415 = vpop.f32.mrb[0].mxu0
    %416 = vmatprep.mubr.f32.mxu0 0.0
    %417 = vmatmul.mubr.f32.gmra.mrb[0].mxu0 %v48
    %v418 = vpop.f32.mrb[0].mxu0
    %v419 = vadd.f32 0.0, %v418
    %v420 = vpop.f32.mrb[0].mxu0
    %421 = vmatprep.mubr.f32.mxu0 0.0
    %422 = vmatmul.mubr.f32.gmra.mrb[0].mxu0 %v49
    %v423 = vpop.f32.mrb[0].mxu0
    %v424 = vadd.f32 0.0, %v423
    %v425 = vpop.f32.mrb[0].mxu0
    %426 = vmatprep.mubr.f32.mxu0 0.0
    %427 = vmatmul.mubr.f32.gmra.mrb[0].mxu0 %v50
    %v428 = vpop.f32.mrb[0].mxu0
    %v429 = vadd.f32 0.0, %v428
    %v430 = vpop.f32.mrb[0].mxu0
    %431 = vmatprep.mubr.f32.mxu0 0.0
    %432 = vmatmul.mubr.f32.gmra.mrb[0].mxu0 %v51
    %v433 = vpop.f32.mrb[0].mxu0
    %v434 = vadd.f32 0.0, %v433
    %v435 = vpop.f32.mrb[0].mxu0
    %436 = vmatprep.mubr.f32.mxu0 0.0
    %437 = vmatmul.mubr.f32.gmra.mrb[0].mxu0 %v52
    %v438 = vpop.f32.mrb[0].mxu0
    %v439 = vadd.f32 0.0, %v438
    %v440 = vpop.f32.mrb[0].mxu0
    %441 = vmatprep.mubr.f32.mxu0 0.0
    %442 = vmatmul.mubr.f32.gmra.mrb[0].mxu0 %v53
    %v443 = vpop.f32.mrb[0].mxu0
    %v444 = vadd.f32 0.0, %v443
    %v445 = vpop.f32.mrb[0].mxu0
    %446 = vmatprep.mubr.f32.mxu0 0.0
    %447 = vmatmul.mubr.f32.gmra.mrb[0].mxu0 %v54
    %v448 = vpop.f32.mrb[0].mxu0
    %v449 = vadd.f32 0.0, %v448
    %v450 = vpop.f32.mrb[0].mxu0
    %451 = vmatprep.mubr.f32.mxu0 0.0
    %452 = vmatmul.mubr.f32.gmra.mrb[0].mxu0 %v55
    %v453 = vpop.f32.mrb[0].mxu0
    %v454 = vadd.f32 0.0, %v453
    %v455 = vpop.f32.mrb[0].mxu0
    %456 = vdwg.mxu0
    %v457 = vmul.f32 %v379, %v249
    %v458 = vmul.f32 %v384, %v251
    %v459 = vmul.f32 %v389, %v253
    %v460 = vmul.f32 %v394, %v255
    %v461 = vmul.f32 %v399, %v257
    %v462 = vmul.f32 %v404, %v259
    %v463 = vmul.f32 %v409, %v261
    %v464 = vmul.f32 %v414, %v263
    %v465 = vmul.f32 %v419, %v265
    %v466 = vmul.f32 %v424, %v267
    %v467 = vmul.f32 %v429, %v269
    %v468 = vmul.f32 %v434, %v271
    %v469 = vmul.f32 %v439, %v273
    %v470 = vmul.f32 %v444, %v275
    %v471 = vmul.f32 %v449, %v277
    %v472 = vmul.f32 %v454, %v279
    %473 = vmatprep.subr.mxu0 0.0
    %474 = vmatpush1.msra.mxu0 %v457
    %475 = vmatprep.subr.mxu0 0.0
    %476 = vmatpush1.msra.mxu0 %v458
    %477 = vmatprep.subr.mxu0 0.0
    %478 = vmatpush1.msra.mxu0 %v459
    %479 = vmatprep.subr.mxu0 0.0
    %480 = vmatpush1.msra.mxu0 %v460
    %481 = vmatprep.subr.mxu0 0.0
    %482 = vmatpush1.msra.mxu0 %v461
    %483 = vmatprep.subr.mxu0 0.0
    %484 = vmatpush1.msra.mxu0 %v462
    %485 = vmatprep.subr.mxu0 0.0
    %486 = vmatpush1.msra.mxu0 %v463
    %487 = vmatprep.subr.mxu0 0.0
    %488 = vmatpush1.msra.mxu0 %v464
    %489 = vmatprep.subr.mxu0 0.0
    %490 = vmatpush1.msra.mxu0 %v465
    %491 = vmatprep.subr.mxu0 0.0
    %492 = vmatpush1.msra.mxu0 %v466
    %493 = vmatprep.subr.mxu0 0.0
    %494 = vmatpush1.msra.mxu0 %v467
    %495 = vmatprep.subr.mxu0 0.0
    %496 = vmatpush1.msra.mxu0 %v468
    %497 = vmatprep.subr.mxu0 0.0
    %498 = vmatpush1.msra.mxu0 %v469
    %499 = vmatprep.subr.mxu0 0.0
    %500 = vmatpush1.msra.mxu0 %v470
    %501 = vmatprep.subr.mxu0 0.0
    %502 = vmatpush1.msra.mxu0 %v471
    %503 = vmatprep.subr.mxu0 0.0
    %504 = vmatpush1.msra.mxu0 %v472
    %505 = vmatprep.subr.mxu0 0.0
    %506 = vmatpush1.msra.mxu0 0.0
    %507 = vmatprep.subr.mxu0 0.0
    %508 = vmatpush1.msra.mxu0 0.0
    %509 = vmatprep.subr.mxu0 0.0
    %510 = vmatpush1.msra.mxu0 0.0
    %511 = vmatprep.subr.mxu0 0.0
    %512 = vmatpush1.msra.mxu0 0.0
    %513 = vmatprep.subr.mxu0 0.0
    %514 = vmatpush1.msra.mxu0 0.0
    %515 = vmatprep.subr.mxu0 0.0
    %516 = vmatpush1.msra.mxu0 0.0
    %517 = vmatprep.subr.mxu0 0.0
    %518 = vmatpush1.msra.mxu0 0.0
    %519 = vmatprep.subr.mxu0 0.0
    %520 = vmatpush1.msra.mxu0 0.0
    %521 = vmatprep.subr.mxu0 0.0
    %522 = vmatpush1.msra.mxu0 0.0
    %523 = vmatprep.subr.mxu0 0.0
    %524 = vmatpush1.msra.mxu0 0.0
    %525 = vmatprep.subr.mxu0 0.0
    %526 = vmatpush1.msra.mxu0 0.0
    %527 = vmatprep.subr.mxu0 0.0
    %528 = vmatpush1.msra.mxu0 0.0
    %529 = vmatprep.subr.mxu0 0.0
    %530 = vmatpush1.msra.mxu0 0.0
    %531 = vmatprep.subr.mxu0 0.0
    %532 = vmatpush1.msra.mxu0 0.0
    %533 = vmatprep.subr.mxu0 0.0
    %534 = vmatpush1.msra.mxu0 0.0
    %535 = vmatprep.subr.mxu0 0.0
    %536 = vmatpush1.msra.mxu0 0.0
    %537 = vmatprep.mubr.f32.mxu0 0.0
    %538 = vmatmul.mubr.f32.gmra.mrb[0].mxu0 %v40
    %v539 = vpop.f32.mrb[0].mxu0
    %v540 = vadd.f32 0.0, %v539
    %v541 = vpop.f32.mrb[0].mxu0
    %542 = vmatprep.mubr.f32.mxu0 0.0
    %543 = vmatmul.mubr.f32.gmra.mrb[0].mxu0 %v41
    %v544 = vpop.f32.mrb[0].mxu0
    %v545 = vadd.f32 0.0, %v544
    %v546 = vpop.f32.mrb[0].mxu0
    %547 = vmatprep.mubr.f32.mxu0 0.0
    %548 = vmatmul.mubr.f32.gmra.mrb[0].mxu0 %v42
    %v549 = vpop.f32.mrb[0].mxu0
    %v550 = vadd.f32 0.0, %v549
    %v551 = vpop.f32.mrb[0].mxu0
    %552 = vmatprep.mubr.f32.mxu0 0.0
    %553 = vmatmul.mubr.f32.gmra.mrb[0].mxu0 %v43
    %v554 = vpop.f32.mrb[0].mxu0
    %v555 = vadd.f32 0.0, %v554
    %v556 = vpop.f32.mrb[0].mxu0
    %557 = vmatprep.mubr.f32.mxu0 0.0
    %558 = vmatmul.mubr.f32.gmra.mrb[0].mxu0 %v44
    %v559 = vpop.f32.mrb[0].mxu0
    %v560 = vadd.f32 0.0, %v559
    %v561 = vpop.f32.mrb[0].mxu0
    %562 = vmatprep.mubr.f32.mxu0 0.0
    %563 = vmatmul.mubr.f32.gmra.mrb[0].mxu0 %v45
    %v564 = vpop.f32.mrb[0].mxu0
    %v565 = vadd.f32 0.0, %v564
    %v566 = vpop.f32.mrb[0].mxu0
    %567 = vmatprep.mubr.f32.mxu0 0.0
    %568 = vmatmul.mubr.f32.gmra.mrb[0].mxu0 %v46
    %v569 = vpop.f32.mrb[0].mxu0
    %v570 = vadd.f32 0.0, %v569
    %v571 = vpop.f32.mrb[0].mxu0
    %572 = vmatprep.mubr.f32.mxu0 0.0
    %573 = vmatmul.mubr.f32.gmra.mrb[0].mxu0 %v47
    %v574 = vpop.f32.mrb[0].mxu0
    %v575 = vadd.f32 0.0, %v574
    %v576 = vpop.f32.mrb[0].mxu0
    %577 = vmatprep.mubr.f32.mxu0 0.0
    %578 = vmatmul.mubr.f32.gmra.mrb[0].mxu0 %v48
    %v579 = vpop.f32.mrb[0].mxu0
    %v580 = vadd.f32 0.0, %v579
    %v581 = vpop.f32.mrb[0].mxu0
    %582 = vmatprep.mubr.f32.mxu0 0.0
    %583 = vmatmul.mubr.f32.gmra.mrb[0].mxu0 %v49
    %v584 = vpop.f32.mrb[0].mxu0
    %v585 = vadd.f32 0.0, %v584
    %v586 = vpop.f32.mrb[0].mxu0
    %587 = vmatprep.mubr.f32.mxu0 0.0
    %588 = vmatmul.mubr.f32.gmra.mrb[0].mxu0 %v50
    %v589 = vpop.f32.mrb[0].mxu0
    %v590 = vadd.f32 0.0, %v589
    %v591 = vpop.f32.mrb[0].mxu0
    %592 = vmatprep.mubr.f32.mxu0 0.0
    %593 = vmatmul.mubr.f32.gmra.mrb[0].mxu0 %v51
    %v594 = vpop.f32.mrb[0].mxu0
    %v595 = vadd.f32 0.0, %v594
    %v596 = vpop.f32.mrb[0].mxu0
    %597 = vmatprep.mubr.f32.mxu0 0.0
    %598 = vmatmul.mubr.f32.gmra.mrb[0].mxu0 %v52
    %v599 = vpop.f32.mrb[0].mxu0
    %v600 = vadd.f32 0.0, %v599
    %v601 = vpop.f32.mrb[0].mxu0
    %602 = vmatprep.mubr.f32.mxu0 0.0
    %603 = vmatmul.mubr.f32.gmra.mrb[0].mxu0 %v53
    %v604 = vpop.f32.mrb[0].mxu0
    %v605 = vadd.f32 0.0, %v604
    %v606 = vpop.f32.mrb[0].mxu0
    %607 = vmatprep.mubr.f32.mxu0 0.0
    %608 = vmatmul.mubr.f32.gmra.mrb[0].mxu0 %v54
    %v609 = vpop.f32.mrb[0].mxu0
    %v610 = vadd.f32 0.0, %v609
    %v611 = vpop.f32.mrb[0].mxu0
    %612 = vmatprep.mubr.f32.mxu0 0.0
    %613 = vmatmul.mubr.f32.gmra.mrb[0].mxu0 %v55
    %v614 = vpop.f32.mrb[0].mxu0
    %v615 = vadd.f32 0.0, %v614
    %v616 = vpop.f32.mrb[0].mxu0
    %617 = vdwg.mxu0
    %v618 = vmul.f32 %v540, %v217
    %v619 = vmul.f32 %v545, %v219
    %v620 = vmul.f32 %v550, %v221
    %v621 = vmul.f32 %v555, %v223
    %v622 = vmul.f32 %v560, %v225
    %v623 = vmul.f32 %v565, %v227
    %v624 = vmul.f32 %v570, %v229
    %v625 = vmul.f32 %v575, %v231
    %v626 = vmul.f32 %v580, %v233
    %v627 = vmul.f32 %v585, %v235
    %v628 = vmul.f32 %v590, %v237
    %v629 = vmul.f32 %v595, %v239
    %v630 = vmul.f32 %v600, %v241
    %v631 = vmul.f32 %v605, %v243
    %v632 = vmul.f32 %v610, %v245
    %v633 = vmul.f32 %v615, %v247
    %vm634 = vcmask 261120
    %635 = vst.msk [vmem:[%s5] sm:$0xff] %vm634, %v618
    %636 = vst.msk [vmem:[%s5 + $0x8] sm:$0xff] %vm634, %v619
    %637 = vst.msk [vmem:[%s5 + $0x10] sm:$0xff] %vm634, %v620
    %638 = vst.msk [vmem:[%s5 + $0x18] sm:$0xff] %vm634, %v621
    %639 = vst.msk [vmem:[%s5 + $0x20] sm:$0xff] %vm634, %v622
    %640 = vst.msk [vmem:[%s5 + $0x28] sm:$0xff] %vm634, %v623
    %641 = vst.msk [vmem:[%s5 + $0x30] sm:$0xff] %vm634, %v624
    %642 = vst.msk [vmem:[%s5 + $0x38] sm:$0xff] %vm634, %v625
    %643 = vst.msk [vmem:[%s5 + $0x40] sm:$0xff] %vm634, %v626
    %644 = vst.msk [vmem:[%s5 + $0x48] sm:$0xff] %vm634, %v627
    %645 = vst.msk [vmem:[%s5 + $0x50] sm:$0xff] %vm634, %v628
    %646 = vst.msk [vmem:[%s5 + $0x58] sm:$0xff] %vm634, %v629
    %647 = vst.msk [vmem:[%s5 + $0x60] sm:$0xff] %vm634, %v630
    %648 = vst.msk [vmem:[%s5 + $0x68] sm:$0xff] %vm634, %v631
    %649 = vst.msk [vmem:[%s5 + $0x70] sm:$0xff] %vm634, %v632
    %650 = vst.msk [vmem:[%s5 + $0x78] sm:$0xff] %vm634, %v633
    %v651 = vld [vmem:[%s2] sm:$0xff]
    %v652 = vld [vmem:[%s2 + $0x8] sm:$0xff]
    %v653 = vld [vmem:[%s2 + $0x10] sm:$0xff]
    %v654 = vld [vmem:[%s2 + $0x18] sm:$0xff]
    %v655 = vld [vmem:[%s3] sm:$0x1]
    %v657 = vlaneseq
    %v658 = vshrl.u32 %v657, 7
    %v659 = vsub.s32 0, %v658
    %v660 = vrot.slane %v655, %v659
    %v663 = vsel %vm634, %v618, 0
    %v666 = vsel %vm634, %v619, 0
    %v669 = vsel %vm634, %v620, 0
    %v672 = vsel %vm634, %v621, 0
    %v675 = vsel %vm634, %v622, 0
    %v678 = vsel %vm634, %v623, 0
    %v681 = vsel %vm634, %v624, 0
    %v684 = vsel %vm634, %v625, 0
    %v687 = vsel %vm634, %v626, 0
    %v690 = vsel %vm634, %v627, 0
    %v693 = vsel %vm634, %v628, 0
    %v696 = vsel %vm634, %v629, 0
    %v699 = vsel %vm634, %v630, 0
    %v702 = vsel %vm634, %v631, 0
    %v705 = vsel %vm634, %v632, 0
    %v708 = vsel %vm634, %v633, 0
    %710 = vmatprep.subr.mxu0 0.0
    %711 = vmatpush1.msra.mxu0 %v651
    %712 = vmatprep.subr.mxu0 0.0
    %713 = vmatpush1.msra.mxu0 %v652
    %714 = vmatprep.subr.mxu0 0.0
    %715 = vmatpush1.msra.mxu0 %v653
    %716 = vmatprep.subr.mxu0 0.0
    %717 = vmatpush1.msra.mxu0 %v654
    %718 = vmatprep.subr.mxu0 0.0
    %719 = vmatpush1.msra.mxu0 0.0
    %720 = vmatprep.subr.mxu0 0.0
    %721 = vmatpush1.msra.mxu0 0.0
    %722 = vmatprep.subr.mxu0 0.0
    %723 = vmatpush1.msra.mxu0 0.0
    %724 = vmatprep.subr.mxu0 0.0
    %725 = vmatpush1.msra.mxu0 0.0
    %726 = vmatprep.subr.mxu0 0.0
    %727 = vmatpush1.msra.mxu0 0.0
    %728 = vmatprep.subr.mxu0 0.0
    %729 = vmatpush1.msra.mxu0 0.0
    %730 = vmatprep.subr.mxu0 0.0
    %731 = vmatpush1.msra.mxu0 0.0
    %732 = vmatprep.subr.mxu0 0.0
    %733 = vmatpush1.msra.mxu0 0.0
    %734 = vmatprep.subr.mxu0 0.0
    %735 = vmatpush1.msra.mxu0 0.0
    %736 = vmatprep.subr.mxu0 0.0
    %737 = vmatpush1.msra.mxu0 0.0
    %738 = vmatprep.subr.mxu0 0.0
    %739 = vmatpush1.msra.mxu0 0.0
    %740 = vmatprep.subr.mxu0 0.0
    %741 = vmatpush1.msra.mxu0 0.0
    %742 = vmatprep.subr.mxu0 0.0
    %743 = vmatpush1.msra.mxu0 0.0
    %744 = vmatprep.subr.mxu0 0.0
    %745 = vmatpush1.msra.mxu0 0.0
    %746 = vmatprep.subr.mxu0 0.0
    %747 = vmatpush1.msra.mxu0 0.0
    %748 = vmatprep.subr.mxu0 0.0
    %749 = vmatpush1.msra.mxu0 0.0
    %750 = vmatprep.subr.mxu0 0.0
    %751 = vmatpush1.msra.mxu0 0.0
    %752 = vmatprep.subr.mxu0 0.0
    %753 = vmatpush1.msra.mxu0 0.0
    %754 = vmatprep.subr.mxu0 0.0
    %755 = vmatpush1.msra.mxu0 0.0
    %756 = vmatprep.subr.mxu0 0.0
    %757 = vmatpush1.msra.mxu0 0.0
    %758 = vmatprep.subr.mxu0 0.0
    %759 = vmatpush1.msra.mxu0 0.0
    %760 = vmatprep.subr.mxu0 0.0
    %761 = vmatpush1.msra.mxu0 0.0
    %762 = vmatprep.subr.mxu0 0.0
    %763 = vmatpush1.msra.mxu0 0.0
    %764 = vmatprep.subr.mxu0 0.0
    %765 = vmatpush1.msra.mxu0 0.0
    %766 = vmatprep.subr.mxu0 0.0
    %767 = vmatpush1.msra.mxu0 0.0
    %768 = vmatprep.subr.mxu0 0.0
    %769 = vmatpush1.msra.mxu0 0.0
    %770 = vmatprep.subr.mxu0 0.0
    %771 = vmatpush1.msra.mxu0 0.0
    %772 = vmatprep.subr.mxu0 0.0
    %773 = vmatpush1.msra.mxu0 0.0
    %774 = vmatprep.mubr.f32.mxu0 0.0
    %775 = vmatmul.mubr.f32.gmra.mrb[0].mxu0 %v663
    %v776 = vpop.f32.mrb[0].mxu0
    %v777 = vadd.f32 %v660, %v776
    %v778 = vpop.f32.mrb[0].mxu0
    %779 = vmatprep.mubr.f32.mxu0 0.0
    %780 = vmatmul.mubr.f32.gmra.mrb[0].mxu0 %v666
    %v781 = vpop.f32.mrb[0].mxu0
    %v782 = vadd.f32 %v660, %v781
    %v783 = vpop.f32.mrb[0].mxu0
    %784 = vmatprep.mubr.f32.mxu0 0.0
    %785 = vmatmul.mubr.f32.gmra.mrb[0].mxu0 %v669
    %v786 = vpop.f32.mrb[0].mxu0
    %v787 = vadd.f32 %v660, %v786
    %v788 = vpop.f32.mrb[0].mxu0
    %789 = vmatprep.mubr.f32.mxu0 0.0
    %790 = vmatmul.mubr.f32.gmra.mrb[0].mxu0 %v672
    %v791 = vpop.f32.mrb[0].mxu0
    %v792 = vadd.f32 %v660, %v791
    %v793 = vpop.f32.mrb[0].mxu0
    %794 = vmatprep.mubr.f32.mxu0 0.0
    %795 = vmatmul.mubr.f32.gmra.mrb[0].mxu0 %v675
    %v796 = vpop.f32.mrb[0].mxu0
    %v797 = vadd.f32 %v660, %v796
    %v798 = vpop.f32.mrb[0].mxu0
    %799 = vmatprep.mubr.f32.mxu0 0.0
    %800 = vmatmul.mubr.f32.gmra.mrb[0].mxu0 %v678
    %v801 = vpop.f32.mrb[0].mxu0
    %v802 = vadd.f32 %v660, %v801
    %v803 = vpop.f32.mrb[0].mxu0
    %804 = vmatprep.mubr.f32.mxu0 0.0
    %805 = vmatmul.mubr.f32.gmra.mrb[0].mxu0 %v681
    %v806 = vpop.f32.mrb[0].mxu0
    %v807 = vadd.f32 %v660, %v806
    %v808 = vpop.f32.mrb[0].mxu0
    %809 = vmatprep.mubr.f32.mxu0 0.0
    %810 = vmatmul.mubr.f32.gmra.mrb[0].mxu0 %v684
    %v811 = vpop.f32.mrb[0].mxu0
    %v812 = vadd.f32 %v660, %v811
    %v813 = vpop.f32.mrb[0].mxu0
    %814 = vmatprep.mubr.f32.mxu0 0.0
    %815 = vmatmul.mubr.f32.gmra.mrb[0].mxu0 %v687
    %v816 = vpop.f32.mrb[0].mxu0
    %v817 = vadd.f32 %v660, %v816
    %v818 = vpop.f32.mrb[0].mxu0
    %819 = vmatprep.mubr.f32.mxu0 0.0
    %820 = vmatmul.mubr.f32.gmra.mrb[0].mxu0 %v690
    %v821 = vpop.f32.mrb[0].mxu0
    %v822 = vadd.f32 %v660, %v821
    %v823 = vpop.f32.mrb[0].mxu0
    %824 = vmatprep.mubr.f32.mxu0 0.0
    %825 = vmatmul.mubr.f32.gmra.mrb[0].mxu0 %v693
    %v826 = vpop.f32.mrb[0].mxu0
    %v827 = vadd.f32 %v660, %v826
    %v828 = vpop.f32.mrb[0].mxu0
    %829 = vmatprep.mubr.f32.mxu0 0.0
    %830 = vmatmul.mubr.f32.gmra.mrb[0].mxu0 %v696
    %v831 = vpop.f32.mrb[0].mxu0
    %v832 = vadd.f32 %v660, %v831
    %v833 = vpop.f32.mrb[0].mxu0
    %834 = vmatprep.mubr.f32.mxu0 0.0
    %835 = vmatmul.mubr.f32.gmra.mrb[0].mxu0 %v699
    %v836 = vpop.f32.mrb[0].mxu0
    %v837 = vadd.f32 %v660, %v836
    %v838 = vpop.f32.mrb[0].mxu0
    %839 = vmatprep.mubr.f32.mxu0 0.0
    %840 = vmatmul.mubr.f32.gmra.mrb[0].mxu0 %v702
    %v841 = vpop.f32.mrb[0].mxu0
    %v842 = vadd.f32 %v660, %v841
    %v843 = vpop.f32.mrb[0].mxu0
    %844 = vmatprep.mubr.f32.mxu0 0.0
    %845 = vmatmul.mubr.f32.gmra.mrb[0].mxu0 %v705
    %v846 = vpop.f32.mrb[0].mxu0
    %v847 = vadd.f32 %v660, %v846
    %v848 = vpop.f32.mrb[0].mxu0
    %849 = vmatprep.mubr.f32.mxu0 0.0
    %850 = vmatmul.mubr.f32.gmra.mrb[0].mxu0 %v708
    %v851 = vpop.f32.mrb[0].mxu0
    %v852 = vadd.f32 %v660, %v851
    %v853 = vpop.f32.mrb[0].mxu0
    %854 = vdwg.mxu0
    %855 = vst [vmem:[#allocation2] sm:$0xff] %v777
    %856 = vst [vmem:[#allocation2 + $0x8] sm:$0xff] %v782
    %857 = vst [vmem:[#allocation2 + $0x10] sm:$0xff] %v787
    %858 = vst [vmem:[#allocation2 + $0x18] sm:$0xff] %v792
    %859 = vst [vmem:[#allocation2 + $0x20] sm:$0xff] %v797
    %860 = vst [vmem:[#allocation2 + $0x28] sm:$0xff] %v802
    %861 = vst [vmem:[#allocation2 + $0x30] sm:$0xff] %v807
    %862 = vst [vmem:[#allocation2 + $0x38] sm:$0xff] %v812
    %863 = vst [vmem:[#allocation2 + $0x40] sm:$0xff] %v817
    %864 = vst [vmem:[#allocation2 + $0x48] sm:$0xff] %v822
    %865 = vst [vmem:[#allocation2 + $0x50] sm:$0xff] %v827
    %866 = vst [vmem:[#allocation2 + $0x58] sm:$0xff] %v832
    %867 = vst [vmem:[#allocation2 + $0x60] sm:$0xff] %v837
    %868 = vst [vmem:[#allocation2 + $0x68] sm:$0xff] %v842
    %869 = vst [vmem:[#allocation2 + $0x70] sm:$0xff] %v847
    %870 = vst [vmem:[#allocation2 + $0x78] sm:$0xff] %v852
    // Predicated region
    $region18: #{tpu_custom_call.1} parent=1 // pred_check
      _
    $region19: #{tpu_custom_call.1} parent=1 // pred_check_branch
      %872 = sbr.rel (0) target = $region21
    $region20: #{tpu_custom_call.1} parent=1 // pred_region
      %s874 = ssub.s32 2048, 2048
      %875 = vsyncadd [#allocation3], %s874
      %s876 = sshll.u32 [#allocation2], 4
      %s877 = int_to_ptr.vmem [resolvable:$true] %s876
      %882 = dma.vmem_to_hbm [thread:$0]  %s877, 2048, %s4, [#allocation3], 128, 128, 8
    $region21: #{tpu_custom_call.1} parent=1 // pred_fallthru
      _
    // Predicated region
    $region22: #{tpu_custom_call.1} parent=1 // pred_check
      _
    $region23: #{tpu_custom_call.1} parent=1 // pred_check_branch
      %884 = sbr.rel (0) target = $region25
    $region24: #{tpu_custom_call.1} parent=1 // pred_region
      _
    $region25: #{tpu_custom_call.1} parent=1 // pred_fallthru
      _
    // Predicated region
    $region26: #{tpu_custom_call.1} parent=1 // pred_check
      _
    $region27: #{tpu_custom_call.1} parent=1 // pred_check_branch
      %886 = sbr.rel (0) target = $region29
    $region28: #{tpu_custom_call.1} parent=1 // pred_region
      %887 = dma.done [#allocation3], 2048
    $region29: #{tpu_custom_call.1} parent=1 // pred_fallthru
      _
    // Predicated region
    $region30: #{tpu_custom_call.1} parent=1 // pred_check
      _
    $region31: #{tpu_custom_call.1} parent=1 // pred_check_branch
      %889 = sbr.rel (0) target = $region33
    $region32: #{tpu_custom_call.1} parent=1 // pred_region
      _
    $region33: #{tpu_custom_call.1} parent=1 // pred_fallthru
      _
    %890 = vsyncpa [#allocation3], 1

</llo_original>
